<compile_context>
chip_gen: v6e
topology: v6e:2x2x1
jax: 0.10.0
libtpu: 0.0.40
codegen_flags: <defaults>
</compile_context>

<pallas_src>
import functools

import jax
import jax.numpy as jnp
from jax.experimental import pallas as pl
from jax.experimental.pallas import tpu as pltpu


def _rope_kernel(cos_ref, sin_ref, q_ref, k_ref, qo_ref, ko_ref, *,
                 head_dim, num_heads):
    """One (sequence-tile, batch) grid step.

    cos_ref, sin_ref : (tS, D)    -- sin has rotate_half's sign pre-folded
    q_ref, k_ref     : (tS, H*D)  -- heads flattened into the lane axis
    qo_ref, ko_ref   : (tS, H*D)
    """
    cos = cos_ref[...]
    sin = sin_ref[...]
    half = head_dim // 2

    def half_swap(xh):
        # concat(x2, x1): rotation by exactly D//2 (the sign lives in `sin`).
        if head_dim % 128 == 0:
            # Lane-aligned head dim: hardware rotate on the XLU slot.
            return pltpu.roll(xh, shift=half, axis=1)
        # Small head dim (e.g. demo D=32): two static lane slices lower
        # robustly and cost equivalent XLU work at this size.
        return jnp.concatenate([xh[:, half:], xh[:, :half]], axis=1)

    def apply(x):  # x: (tS, H*D)
        parts = []
        for h in range(num_heads):           # static unroll over heads
            xh = x[:, h * head_dim:(h + 1) * head_dim]        # (tS, D)
            parts.append(xh * cos + half_swap(xh) * sin)
        if num_heads == 1:
            return parts[0]
        return jnp.concatenate(parts, axis=1)                  # (tS, H*D)

    qo_ref[...] = apply(q_ref[...]).astype(qo_ref.dtype)
    ko_ref[...] = apply(k_ref[...]).astype(ko_ref.dtype)


def _choose_seq_tile(seq_len, bytes_per_row, vmem_budget_bytes=24 << 20):
    """Largest sequence tile whose pipelined footprint fits the VMEM budget.

    Footprint ~= 4 tensors (q, k, q_out, k_out) x 2 pipeline buffers x tile;
    the (tS, D) cos/sin tiles are comparatively tiny.  24 MiB keeps us inside
    the default scoped VMEM on v6e/v7x and well inside v7x's 64 MiB physical
    VMEM; on v5e the scoped limit is raised via vmem_limit_bytes.
    """
    cap = vmem_budget_bytes // (4 * 2 * max(bytes_per_row, 1))
    if cap >= seq_len:
        return seq_len
    cap = max(8, (cap // 8) * 8)
    for t in range(cap, 7, -8):              # multiple of 8 (sublane rule)
        if seq_len % t == 0:
            return t
    return seq_len                           # no good divisor: single tile


class RotaryEmbedding:
    """JAX/Pallas port of the PyTorch RotaryEmbedding module."""

    def __init__(self, dim, max_seq_len=1024):
        assert dim % 2 == 0, "rotary dim must be even"
        self.dim = dim
        self.max_seq_len = max_seq_len
        inv_freq = 1.0 / (10000.0 ** (jnp.arange(0, dim, 2, dtype=jnp.float32) / dim))
        t = jnp.arange(max_seq_len, dtype=jnp.float32)[:, None]     # (L, 1)
        freqs = t @ inv_freq[None, :]                               # (L, dim//2)
        freqs = jnp.concatenate([freqs, freqs], axis=-1)            # (L, dim)
        self.cos_cached = jnp.cos(freqs)
        self.sin_cached = jnp.sin(freqs)
        # rotate_half(q) * sin == half_swap(q) * sin_signed with
        # sin_signed = concat(-sin[:, :d/2], sin[:, d/2:]).  Fold the sign
        # here (in f32, before any dtype cast) so the kernel has no negate.
        half = dim // 2
        self.sin_signed_cached = jnp.concatenate(
            [-self.sin_cached[:, :half], self.sin_cached[:, half:]], axis=-1)

    def __call__(self, q, k, *, seq_tile=None):
        # q, k: (B, S, H, D)
        B, S, H, D = q.shape
        assert k.shape == q.shape
        assert D == self.dim and S <= self.max_seq_len

        dtype = q.dtype
        cos = self.cos_cached[:S, :].astype(dtype)            # (S, D)
        sin = self.sin_signed_cached[:S, :].astype(dtype)     # (S, D)

        # Flatten heads into the lane axis (free, contiguous reshape) so all
        # kernel blocks are lane-dense in their last dim.
        N = H * D
        qf = q.reshape(B, S, N)
        kf = k.reshape(B, S, N)

        if seq_tile is None:
            tS = _choose_seq_tile(S, N * dtype.itemsize)
        else:
            assert S % seq_tile == 0 and (seq_tile % 8 == 0 or seq_tile == S)
            tS = seq_tile
        grid = (S // tS, B)   # s outermost: cos/sin index constant over b

        def qk_spec():
            return pl.BlockSpec((None, tS, N), lambda s, b: (b, s, 0))

        def cs_spec():
            return pl.BlockSpec((tS, D), lambda s, b: (s, 0))

        grid_spec = pltpu.PrefetchScalarGridSpec(
            num_scalar_prefetch=0,
            grid=grid,
            in_specs=[cs_spec(), cs_spec(), qk_spec(), qk_spec()],
            out_specs=[qk_spec(), qk_spec()],
        )

        kernel = functools.partial(_rope_kernel, head_dim=D, num_heads=H)
        out_shape = (jax.ShapeDtypeStruct((B, S, N), dtype),
                     jax.ShapeDtypeStruct((B, S, N), dtype))

        qo, ko = pl.pallas_call(
            kernel,
            out_shape=out_shape,
            grid_spec=grid_spec,
            compiler_params=pltpu.CompilerParams(
                # Every grid point is independent -> both axes parallel
                # (lets v7x's two TensorCores share the work even at small B).
                dimension_semantics=("parallel", "parallel"),
                # Raise v5e's 16 MiB default scoped VMEM so the ~24 MiB tile
                # budget is usable there too (<= defaults on v6e / v7x).
                vmem_limit_bytes=32 * 1024 * 1024,
            ),
        )(cos, sin, qf, kf)

        return qo.reshape(B, S, H, D), ko.reshape(B, S, H, D)


# ----------------------------- reference -----------------------------------

def _rotate_half(x):
    d = x.shape[-1] // 2
    return jnp.concatenate([-x[..., d:], x[..., :d]], axis=-1)


def _reference(q, k, cos, sin):
    cos_b = cos[None, :, None, :]
    sin_b = sin[None, :, None, :]
    return (q * cos_b + _rotate_half(q) * sin_b,
            k * cos_b + _rotate_half(k) * sin_b)


if __name__ == "__main__":
    key = jax.random.PRNGKey(0)
    kq, kk = jax.random.split(key)

    # Primary check: module-sized shapes (B, S, H, D).
    B, S, H, D = 2, 8, 4, 32
    q = jax.random.normal(kq, (B, S, H, D), dtype=jnp.float32)
    k = jax.random.normal(kk, (B, S, H, D), dtype=jnp.float32)

    rope = RotaryEmbedding(dim=D, max_seq_len=64)
    q_out, k_out = rope(q, k)
    jax.block_until_ready((q_out, k_out))

    q_ref, k_ref = _reference(q, k, rope.cos_cached[:S], rope.sin_cached[:S])
    assert jnp.allclose(q_out, q_ref, atol=1e-5, rtol=1e-5)
    assert jnp.allclose(k_out, k_ref, atol=1e-5, rtol=1e-5)

    # Second check: force a multi-tile sequence grid (exercise the S tiling).
    B2, S2 = 1, 32
    kq2, kk2 = jax.random.split(jax.random.PRNGKey(1))
    q2 = jax.random.normal(kq2, (B2, S2, H, D), dtype=jnp.float32)
    k2 = jax.random.normal(kk2, (B2, S2, H, D), dtype=jnp.float32)
    q2_out, k2_out = rope(q2, k2, seq_tile=8)          # grid = (4, 1)
    jax.block_until_ready((q2_out, k2_out))
    q2_ref, k2_ref = _reference(q2, k2, rope.cos_cached[:S2], rope.sin_cached[:S2])
    assert jnp.allclose(q2_out, q2_ref, atol=1e-5, rtol=1e-5)
    assert jnp.allclose(k2_out, k2_ref, atol=1e-5, rtol=1e-5)

    print("KERNEL_OK")
</pallas_src>

<mosaic_0001>
module attributes {stable_mosaic.version = 11 : i64} {
  func.func @_rope_kernel(%arg0: i32, %arg1: i32, %arg2: memref<8x32xf32, #tpu.memory_space<vmem>>, %arg3: memref<8x32xf32, #tpu.memory_space<vmem>>, %arg4: memref<1x8x128xf32, #tpu.memory_space<vmem>>, %arg5: memref<1x8x128xf32, #tpu.memory_space<vmem>>, %arg6: memref<1x8x128xf32, #tpu.memory_space<vmem>>, %arg7: memref<1x8x128xf32, #tpu.memory_space<vmem>>) attributes {dimension_semantics = [#tpu.dimension_semantics<parallel>, #tpu.dimension_semantics<parallel>], iteration_bounds = array<i64: 1, 2>, scalar_prefetch = 0 : i64, scratch_operands = 0 : i64, tpu.core_type = #tpu.core_type<tc>, window_params = [{transform_indices = @transform_0, window_bounds = array<i64: 8, 32>}, {transform_indices = @transform_1, window_bounds = array<i64: 8, 32>}, {transform_indices = @transform_2, window_bounds = array<i64: 1, 8, 128>}, {transform_indices = @transform_3, window_bounds = array<i64: 1, 8, 128>}, {transform_indices = @transform_4, window_bounds = array<i64: 1, 8, 128>}, {transform_indices = @transform_5, window_bounds = array<i64: 1, 8, 128>}]} {
    %c0 = arith.constant 0 : index
    %c0_0 = arith.constant 0 : index
    %0 = vector.load %arg2[%c0, %c0_0] : memref<8x32xf32, #tpu.memory_space<vmem>>, vector<8x32xf32>
    %c0_1 = arith.constant 0 : index
    %c0_2 = arith.constant 0 : index
    %1 = vector.load %arg3[%c0_1, %c0_2] : memref<8x32xf32, #tpu.memory_space<vmem>>, vector<8x32xf32>
    %c0_3 = arith.constant 0 : index
    %c0_4 = arith.constant 0 : index
    %c0_5 = arith.constant 0 : index
    %2 = vector.load %arg4[%c0_3, %c0_4, %c0_5] : memref<1x8x128xf32, #tpu.memory_space<vmem>>, vector<1x8x128xf32>
    %3 = vector.shape_cast %2 : vector<1x8x128xf32> to vector<8x128xf32>
    %4 = vector.extract_strided_slice %3 {offsets = [0, 0], sizes = [8, 32], strides = [1, 1]} : vector<8x128xf32> to vector<8x32xf32>
    %5 = arith.mulf %4, %0 : vector<8x32xf32>
    %6 = vector.extract_strided_slice %4 {offsets = [0, 16], sizes = [8, 16], strides = [1, 1]} : vector<8x32xf32> to vector<8x16xf32>
    %7 = vector.extract_strided_slice %4 {offsets = [0, 0], sizes = [8, 16], strides = [1, 1]} : vector<8x32xf32> to vector<8x16xf32>
    %8 = tpu.concatenate %6, %7 in 1 : vector<8x16xf32>, vector<8x16xf32> -> vector<8x32xf32>
    %9 = arith.mulf %8, %1 : vector<8x32xf32>
    %10 = arith.addf %5, %9 : vector<8x32xf32>
    %11 = vector.extract_strided_slice %3 {offsets = [0, 32], sizes = [8, 32], strides = [1, 1]} : vector<8x128xf32> to vector<8x32xf32>
    %12 = arith.mulf %11, %0 : vector<8x32xf32>
    %13 = vector.extract_strided_slice %11 {offsets = [0, 16], sizes = [8, 16], strides = [1, 1]} : vector<8x32xf32> to vector<8x16xf32>
    %14 = vector.extract_strided_slice %11 {offsets = [0, 0], sizes = [8, 16], strides = [1, 1]} : vector<8x32xf32> to vector<8x16xf32>
    %15 = tpu.concatenate %13, %14 in 1 : vector<8x16xf32>, vector<8x16xf32> -> vector<8x32xf32>
    %16 = arith.mulf %15, %1 : vector<8x32xf32>
    %17 = arith.addf %12, %16 : vector<8x32xf32>
    %18 = vector.extract_strided_slice %3 {offsets = [0, 64], sizes = [8, 32], strides = [1, 1]} : vector<8x128xf32> to vector<8x32xf32>
    %19 = arith.mulf %18, %0 : vector<8x32xf32>
    %20 = vector.extract_strided_slice %18 {offsets = [0, 16], sizes = [8, 16], strides = [1, 1]} : vector<8x32xf32> to vector<8x16xf32>
    %21 = vector.extract_strided_slice %18 {offsets = [0, 0], sizes = [8, 16], strides = [1, 1]} : vector<8x32xf32> to vector<8x16xf32>
    %22 = tpu.concatenate %20, %21 in 1 : vector<8x16xf32>, vector<8x16xf32> -> vector<8x32xf32>
    %23 = arith.mulf %22, %1 : vector<8x32xf32>
    %24 = arith.addf %19, %23 : vector<8x32xf32>
    %25 = vector.extract_strided_slice %3 {offsets = [0, 96], sizes = [8, 32], strides = [1, 1]} : vector<8x128xf32> to vector<8x32xf32>
    %26 = arith.mulf %25, %0 : vector<8x32xf32>
    %27 = vector.extract_strided_slice %25 {offsets = [0, 16], sizes = [8, 16], strides = [1, 1]} : vector<8x32xf32> to vector<8x16xf32>
    %28 = vector.extract_strided_slice %25 {offsets = [0, 0], sizes = [8, 16], strides = [1, 1]} : vector<8x32xf32> to vector<8x16xf32>
    %29 = tpu.concatenate %27, %28 in 1 : vector<8x16xf32>, vector<8x16xf32> -> vector<8x32xf32>
    %30 = arith.mulf %29, %1 : vector<8x32xf32>
    %31 = arith.addf %26, %30 : vector<8x32xf32>
    %32 = tpu.concatenate %10, %17, %24, %31 in 1 : vector<8x32xf32>, vector<8x32xf32>, vector<8x32xf32>, vector<8x32xf32> -> vector<8x128xf32>
    %c0_6 = arith.constant 0 : index
    %c0_7 = arith.constant 0 : index
    %c0_8 = arith.constant 0 : index
    %33 = vector.load %arg6[%c0_6, %c0_7, %c0_8] : memref<1x8x128xf32, #tpu.memory_space<vmem>>, vector<1x8x128xf32>
    %34 = vector.shape_cast %33 : vector<1x8x128xf32> to vector<8x128xf32>
    %35 = vector.shape_cast %32 : vector<8x128xf32> to vector<1x8x128xf32>
    tpu.vector_store %arg6[%c0_6, %c0_7, %c0_8], %35 {strides = array<i32>} : memref<1x8x128xf32, #tpu.memory_space<vmem>>, vector<1x8x128xf32>,
    %c0_9 = arith.constant 0 : index
    %c0_10 = arith.constant 0 : index
    %c0_11 = arith.constant 0 : index
    %36 = vector.load %arg5[%c0_9, %c0_10, %c0_11] : memref<1x8x128xf32, #tpu.memory_space<vmem>>, vector<1x8x128xf32>
    %37 = vector.shape_cast %36 : vector<1x8x128xf32> to vector<8x128xf32>
    %38 = vector.extract_strided_slice %37 {offsets = [0, 0], sizes = [8, 32], strides = [1, 1]} : vector<8x128xf32> to vector<8x32xf32>
    %39 = arith.mulf %38, %0 : vector<8x32xf32>
    %40 = vector.extract_strided_slice %38 {offsets = [0, 16], sizes = [8, 16], strides = [1, 1]} : vector<8x32xf32> to vector<8x16xf32>
    %41 = vector.extract_strided_slice %38 {offsets = [0, 0], sizes = [8, 16], strides = [1, 1]} : vector<8x32xf32> to vector<8x16xf32>
    %42 = tpu.concatenate %40, %41 in 1 : vector<8x16xf32>, vector<8x16xf32> -> vector<8x32xf32>
    %43 = arith.mulf %42, %1 : vector<8x32xf32>
    %44 = arith.addf %39, %43 : vector<8x32xf32>
    %45 = vector.extract_strided_slice %37 {offsets = [0, 32], sizes = [8, 32], strides = [1, 1]} : vector<8x128xf32> to vector<8x32xf32>
    %46 = arith.mulf %45, %0 : vector<8x32xf32>
    %47 = vector.extract_strided_slice %45 {offsets = [0, 16], sizes = [8, 16], strides = [1, 1]} : vector<8x32xf32> to vector<8x16xf32>
    %48 = vector.extract_strided_slice %45 {offsets = [0, 0], sizes = [8, 16], strides = [1, 1]} : vector<8x32xf32> to vector<8x16xf32>
    %49 = tpu.concatenate %47, %48 in 1 : vector<8x16xf32>, vector<8x16xf32> -> vector<8x32xf32>
    %50 = arith.mulf %49, %1 : vector<8x32xf32>
    %51 = arith.addf %46, %50 : vector<8x32xf32>
    %52 = vector.extract_strided_slice %37 {offsets = [0, 64], sizes = [8, 32], strides = [1, 1]} : vector<8x128xf32> to vector<8x32xf32>
    %53 = arith.mulf %52, %0 : vector<8x32xf32>
    %54 = vector.extract_strided_slice %52 {offsets = [0, 16], sizes = [8, 16], strides = [1, 1]} : vector<8x32xf32> to vector<8x16xf32>
    %55 = vector.extract_strided_slice %52 {offsets = [0, 0], sizes = [8, 16], strides = [1, 1]} : vector<8x32xf32> to vector<8x16xf32>
    %56 = tpu.concatenate %54, %55 in 1 : vector<8x16xf32>, vector<8x16xf32> -> vector<8x32xf32>
    %57 = arith.mulf %56, %1 : vector<8x32xf32>
    %58 = arith.addf %53, %57 : vector<8x32xf32>
    %59 = vector.extract_strided_slice %37 {offsets = [0, 96], sizes = [8, 32], strides = [1, 1]} : vector<8x128xf32> to vector<8x32xf32>
    %60 = arith.mulf %59, %0 : vector<8x32xf32>
    %61 = vector.extract_strided_slice %59 {offsets = [0, 16], sizes = [8, 16], strides = [1, 1]} : vector<8x32xf32> to vector<8x16xf32>
    %62 = vector.extract_strided_slice %59 {offsets = [0, 0], sizes = [8, 16], strides = [1, 1]} : vector<8x32xf32> to vector<8x16xf32>
    %63 = tpu.concatenate %61, %62 in 1 : vector<8x16xf32>, vector<8x16xf32> -> vector<8x32xf32>
    %64 = arith.mulf %63, %1 : vector<8x32xf32>
    %65 = arith.addf %60, %64 : vector<8x32xf32>
    %66 = tpu.concatenate %44, %51, %58, %65 in 1 : vector<8x32xf32>, vector<8x32xf32>, vector<8x32xf32>, vector<8x32xf32> -> vector<8x128xf32>
    %c0_12 = arith.constant 0 : index
    %c0_13 = arith.constant 0 : index
    %c0_14 = arith.constant 0 : index
    %67 = vector.load %arg7[%c0_12, %c0_13, %c0_14] : memref<1x8x128xf32, #tpu.memory_space<vmem>>, vector<1x8x128xf32>
    %68 = vector.shape_cast %67 : vector<1x8x128xf32> to vector<8x128xf32>
    %69 = vector.shape_cast %66 : vector<8x128xf32> to vector<1x8x128xf32>
    tpu.vector_store %arg7[%c0_12, %c0_13, %c0_14], %69 {strides = array<i32>} : memref<1x8x128xf32, #tpu.memory_space<vmem>>, vector<1x8x128xf32>,
    return
  }
  func.func @transform_0(%arg0: i32, %arg1: i32) -> (i32, i32) {
    %c0_i32 = arith.constant 0 : i32
    %c0_i32_0 = arith.constant 0 : i32
    return %arg0, %c0_i32 : i32, i32
  }
  func.func @transform_1(%arg0: i32, %arg1: i32) -> (i32, i32) {
    %c0_i32 = arith.constant 0 : i32
    %c0_i32_0 = arith.constant 0 : i32
    return %arg0, %c0_i32 : i32, i32
  }
  func.func @transform_2(%arg0: i32, %arg1: i32) -> (i32, i32, i32) {
    %c0_i32 = arith.constant 0 : i32
    %c0_i32_0 = arith.constant 0 : i32
    return %arg1, %arg0, %c0_i32 : i32, i32, i32
  }
  func.func @transform_3(%arg0: i32, %arg1: i32) -> (i32, i32, i32) {
    %c0_i32 = arith.constant 0 : i32
    %c0_i32_0 = arith.constant 0 : i32
    return %arg1, %arg0, %c0_i32 : i32, i32, i32
  }
  func.func @transform_4(%arg0: i32, %arg1: i32) -> (i32, i32, i32) {
    %c0_i32 = arith.constant 0 : i32
    %c0_i32_0 = arith.constant 0 : i32
    return %arg1, %arg0, %c0_i32 : i32, i32, i32
  }
  func.func @transform_5(%arg0: i32, %arg1: i32) -> (i32, i32, i32) {
    %c0_i32 = arith.constant 0 : i32
    %c0_i32_0 = arith.constant 0 : i32
    return %arg1, %arg0, %c0_i32 : i32, i32, i32
  }
}

</mosaic_0001>

<llo_original>
// kernel: tpu_custom_call.1
$region0: #{tpu_custom_call.1}
  #allocation0 [shape = 'u32[]', space=smem, size = 0x4, offset = 0x4, fixed_abs, tag = 'smem constant byte address 0x4 - core index']
  #allocation1 [shape = 'u32[144,128]{1,0:T(1,128)}', space=vmem, size = 0x12000, scoped, tag = 'internal scratch']
  %s0 = inlined_call_operand.hbm [shape: f32[8,32], index: 0, kind: input, shape index: {}]
  %s1 = inlined_call_operand.hbm [shape: f32[8,32], index: 1, kind: input, shape index: {}]
  %s2 = inlined_call_operand.hbm [shape: f32[2,8,128], index: 2, kind: input, shape index: {}]
  %s3 = inlined_call_operand.hbm [shape: f32[2,8,128], index: 3, kind: input, shape index: {}]
  %s4 = inlined_call_operand.hbm [shape: f32[2,8,128], index: 4, kind: output, shape index: {0}]
  %s5 = inlined_call_operand.hbm [shape: f32[2,8,128], index: 5, kind: output, shape index: {1}]
  %6 = xla_tuple %s4, %s5
  %s7 = sld [smem:[#allocation0]]
  $region73: #{tpu_custom_call.1} parent=0
    _
  %s9 = ssub.s32 1, %s7
  %s10 = scalar_select 0, %s9, %s7
  $region1: #{tpu_custom_call.1} parent=0
    #allocation2 [shape = 'u8[4096]{0}', space=vmem, size = 0x1000, scoped, tag = 'input window, operand 0, single buffered']
    #allocation3 [shape = 's32[2]{0}', space=sflag, size = 0x8, scoped, tag = 'scoped memory for tpu_custom_call.1']
    #allocation4 [shape = 's32[2]{0}', space=sflag, size = 0x8, scoped, tag = 'scoped memory for tpu_custom_call.1']
    #allocation5 [shape = 'u8[4096]{0}', space=vmem, size = 0x1000, scoped, tag = 'input window, operand 1, single buffered']
    #allocation6 [shape = 's32[1]{0}', space=sflag, size = 0x4, scoped, tag = 'scoped memory for tpu_custom_call.1']
    #allocation7 [shape = 'u8[8192]{0}', space=vmem, size = 0x2000, scoped, tag = 'input window, operand 2']
    #allocation8 [shape = 'u8[8192]{0}', space=vmem, size = 0x2000, scoped, tag = 'input window, operand 3']
    #allocation9 [shape = 'u8[8192]{0}', space=vmem, size = 0x2000, scoped, tag = 'output window, operand 0']
    #allocation10 [shape = 'u8[8192]{0}', space=vmem, size = 0x2000, scoped, tag = 'output window, operand 1']
    #allocation11 [shape = 's32[2]{0}', space=sflag, size = 0x8, scoped, tag = 'scoped memory for tpu_custom_call.1']
    %11 = vsyncpa [#allocation3], 0
    %12 = vsyncpa [#allocation6], 0
    %13 = vsyncpa [#allocation4], 0
    %s14 = scalar_lea.sflag [#allocation4], 1
    %15 = vsyncpa %s14, 0
    %16 = vsyncpa [#allocation11], 0
    %s17 = scalar_lea.sflag [#allocation11], 1
    %18 = vsyncpa %s17, 0
    loop: start=0, step=1, limit=4
    $region2: #{tpu_custom_call.1} parent=1 // loop_pre_header
      _
    $region3: #{tpu_custom_call.1} parent=1 // loop_header
      %s20 = sphi 0, %s24
      %p21 = scmp.ge.s32.totalorder %s20, 4
      %s27 = sphi 0, %s39
      %s28 = sphi 0, %s35
      %s29 = sphi 0, %s27
      %s30 = sphi 0, %s28
      %s31 = sphi 0, %s29
      %s32 = sphi 0, %s30
      %s42 = sphi 0, %s44
      %s45 = sphi 0, %s42
      %s46 = sphi 0, %s45
      %s62 = sphi 0, %s46
      %s68 = sphi 0, %s70
      %s71 = sphi 0, %s68
      %s72 = sphi 0, %s71
      %s88 = sphi 0, %s72
      %s96 = sphi 0, %s98
      %s99 = sphi 0, %s96
      %s100 = sphi 0, %s99
      %s116 = sphi 0, %s100
      %s124 = sphi 0, %s126
      %s127 = sphi 0, %s124
      %s128 = sphi 0, %s127
      %s144 = sphi 0, %s128
      %s152 = sphi 0, %s154
      %s155 = sphi 0, %s152
      %s156 = sphi 0, %s155
      %s172 = sphi 0, %s156
      %s180 = sphi 0, %s182
      %s183 = sphi 0, %s180
      %s184 = sphi 0, %s183
      %s200 = sphi 0, %s184
    $region4: #{tpu_custom_call.1} parent=1 // loop_header_branch
      %23 = sbr.rel (%p21) target = $region8
    $region5: #{tpu_custom_call.1} parent=1 // loop_body
      %s25 = ssub.s32 %s20, 1
      %s26 = ssub.s32 %s20, 2
      %s33 = sadd.s32 1, %s28
      %p34 = scmp.ge.s32.totalorder %s33, 2
      %s35 = scalar_select %p34, 0, %s33
      %s36 = sadd.s32 1, %s27
      %s37 = scalar_select %p34, %s36, %s27
      %p38 = scmp.ge.s32.totalorder %s37, 1
      %s39 = scalar_select %p38, 0, %s37
      %s40 = ssub.s32 %s27, %s39
      %p41 = scmp.eq.s32.totalorder %s40, 0
      %s43 = sadd.s32 %s42, 1
      %s44 = scalar_select %p41, %s42, %s43
      %p47 = pneg %p41
      %p48 = scmp.eq.s32.totalorder %s20, 1
      %p49 = por %p47, %p48
      %p50 = scmp.ne.s32.totalorder %s42, %s45
      %p51 = scmp.eq.s32.totalorder %s20, 0
      %p52 = por %p50, %p51
      %p53 = scmp.ne.s32.totalorder %s42, %s45
      %p54 = scmp.eq.s32.totalorder %s25, 1
      %p55 = por %p53, %p54
      %p56 = scmp.ne.s32.totalorder %s45, %s46
      %p57 = scmp.eq.s32.totalorder %s25, 0
      %p58 = por %p56, %p57
      %p59 = scmp.ne.s32.totalorder %s45, %s46
      %p60 = scmp.eq.s32.totalorder %s26, 1
      %p61 = por %p59, %p60
      %p63 = scmp.ne.s32.totalorder %s46, %s62
      %p64 = scmp.eq.s32.totalorder %s26, 0
      %p65 = por %p63, %p64
      %s66 = ssub.s32 %s27, %s39
      %p67 = scmp.eq.s32.totalorder %s66, 0
      %s69 = sadd.s32 %s68, 1
      %s70 = scalar_select %p67, %s68, %s69
      %p73 = pneg %p67
      %p74 = scmp.eq.s32.totalorder %s20, 1
      %p75 = por %p73, %p74
      %p76 = scmp.ne.s32.totalorder %s68, %s71
      %p77 = scmp.eq.s32.totalorder %s20, 0
      %p78 = por %p76, %p77
      %p79 = scmp.ne.s32.totalorder %s68, %s71
      %p80 = scmp.eq.s32.totalorder %s25, 1
      %p81 = por %p79, %p80
      %p82 = scmp.ne.s32.totalorder %s71, %s72
      %p83 = scmp.eq.s32.totalorder %s25, 0
      %p84 = por %p82, %p83
      %p85 = scmp.ne.s32.totalorder %s71, %s72
      %p86 = scmp.eq.s32.totalorder %s26, 1
      %p87 = por %p85, %p86
      %p89 = scmp.ne.s32.totalorder %s72, %s88
      %p90 = scmp.eq.s32.totalorder %s26, 0
      %p91 = por %p89, %p90
      %s92 = ssub.s32 %s28, %s35
      %s93 = ssub.s32 %s27, %s39
      %s94 = sor.u32 %s92, %s93
      %p95 = scmp.eq.s32.totalorder %s94, 0
      %s97 = sadd.s32 %s96, 1
      %s98 = scalar_select %p95, %s96, %s97
      %p101 = pneg %p95
      %p102 = scmp.eq.s32.totalorder %s20, 1
      %p103 = por %p101, %p102
      %p104 = scmp.ne.s32.totalorder %s96, %s99
      %p105 = scmp.eq.s32.totalorder %s20, 0
      %p106 = por %p104, %p105
      %p107 = scmp.ne.s32.totalorder %s96, %s99
      %p108 = scmp.eq.s32.totalorder %s25, 1
      %p109 = por %p107, %p108
      %p110 = scmp.ne.s32.totalorder %s99, %s100
      %p111 = scmp.eq.s32.totalorder %s25, 0
      %p112 = por %p110, %p111
      %p113 = scmp.ne.s32.totalorder %s99, %s100
      %p114 = scmp.eq.s32.totalorder %s26, 1
      %p115 = por %p113, %p114
      %p117 = scmp.ne.s32.totalorder %s100, %s116
      %p118 = scmp.eq.s32.totalorder %s26, 0
      %p119 = por %p117, %p118
      %s120 = ssub.s32 %s28, %s35
      %s121 = ssub.s32 %s27, %s39
      %s122 = sor.u32 %s120, %s121
      %p123 = scmp.eq.s32.totalorder %s122, 0
      %s125 = sadd.s32 %s124, 1
      %s126 = scalar_select %p123, %s124, %s125
      %p129 = pneg %p123
      %p130 = scmp.eq.s32.totalorder %s20, 1
      %p131 = por %p129, %p130
      %p132 = scmp.ne.s32.totalorder %s124, %s127
      %p133 = scmp.eq.s32.totalorder %s20, 0
      %p134 = por %p132, %p133
      %p135 = scmp.ne.s32.totalorder %s124, %s127
      %p136 = scmp.eq.s32.totalorder %s25, 1
      %p137 = por %p135, %p136
      %p138 = scmp.ne.s32.totalorder %s127, %s128
      %p139 = scmp.eq.s32.totalorder %s25, 0
      %p140 = por %p138, %p139
      %p141 = scmp.ne.s32.totalorder %s127, %s128
      %p142 = scmp.eq.s32.totalorder %s26, 1
      %p143 = por %p141, %p142
      %p145 = scmp.ne.s32.totalorder %s128, %s144
      %p146 = scmp.eq.s32.totalorder %s26, 0
      %p147 = por %p145, %p146
      %s148 = ssub.s32 %s28, %s35
      %s149 = ssub.s32 %s27, %s39
      %s150 = sor.u32 %s148, %s149
      %p151 = scmp.eq.s32.totalorder %s150, 0
      %s153 = sadd.s32 %s152, 1
      %s154 = scalar_select %p151, %s152, %s153
      %p157 = pneg %p151
      %p158 = scmp.eq.s32.totalorder %s20, 1
      %p159 = por %p157, %p158
      %p160 = scmp.ne.s32.totalorder %s152, %s155
      %p161 = scmp.eq.s32.totalorder %s20, 0
      %p162 = por %p160, %p161
      %p163 = scmp.ne.s32.totalorder %s152, %s155
      %p164 = scmp.eq.s32.totalorder %s25, 1
      %p165 = por %p163, %p164
      %p166 = scmp.ne.s32.totalorder %s155, %s156
      %p167 = scmp.eq.s32.totalorder %s25, 0
      %p168 = por %p166, %p167
      %p169 = scmp.ne.s32.totalorder %s155, %s156
      %p170 = scmp.eq.s32.totalorder %s26, 1
      %p171 = por %p169, %p170
      %p173 = scmp.ne.s32.totalorder %s156, %s172
      %p174 = scmp.eq.s32.totalorder %s26, 0
      %p175 = por %p173, %p174
      %s176 = ssub.s32 %s28, %s35
      %s177 = ssub.s32 %s27, %s39
      %s178 = sor.u32 %s176, %s177
      %p179 = scmp.eq.s32.totalorder %s178, 0
      %s181 = sadd.s32 %s180, 1
      %s182 = scalar_select %p179, %s180, %s181
      %p185 = pneg %p179
      %p186 = scmp.eq.s32.totalorder %s20, 1
      %p187 = por %p185, %p186
      %p188 = scmp.ne.s32.totalorder %s180, %s183
      %p189 = scmp.eq.s32.totalorder %s20, 0
      %p190 = por %p188, %p189
      %p191 = scmp.ne.s32.totalorder %s180, %s183
      %p192 = scmp.eq.s32.totalorder %s25, 1
      %p193 = por %p191, %p192
      %p194 = scmp.ne.s32.totalorder %s183, %s184
      %p195 = scmp.eq.s32.totalorder %s25, 0
      %p196 = por %p194, %p195
      %p197 = scmp.ne.s32.totalorder %s183, %s184
      %p198 = scmp.eq.s32.totalorder %s26, 1
      %p199 = por %p197, %p198
      %p201 = scmp.ne.s32.totalorder %s184, %s200
      %p202 = scmp.eq.s32.totalorder %s26, 0
      %p203 = por %p201, %p202
      %p204 = scmp.le.s32.totalorder 1, %s20
      %p205 = scmp.lt.s32.totalorder %s20, 3
      %p206 = pnand %p204, %p205
      %p207 = pneg %p206
      // Predicated region
      $region9: #{tpu_custom_call.1} parent=5 // pred_check
        _
      $region10: #{tpu_custom_call.1} parent=5 // pred_check_branch
        %209 = sbr.rel (%p206) target = $region12
      $region11: #{tpu_custom_call.1} parent=5 // pred_region
        %s210 = ssub.s32 %s20, 1
        // Predicated region
        $region13: #{tpu_custom_call.1} parent=11 // pred_check
          %p211 = pneg %p58
        $region14: #{tpu_custom_call.1} parent=11 // pred_check_branch
          %213 = sbr.rel (%p211) target = $region16
        $region15: #{tpu_custom_call.1} parent=11 // pred_region
          %s215 = ssub.s32 128, 128
          %216 = vsyncadd [#allocation3], %s215
          %s217 = smul.addr %s29, 128
          %s218 = scalar_lea.hbm %s0, %s217
          %s220 = sshll.u32 [#allocation2], 4
          %s221 = int_to_ptr.vmem [resolvable:$true] %s220
          %223 = dma.hbm_to_vmem [thread:$0]  %s218, 128, %s221, [#allocation3]
        $region16: #{tpu_custom_call.1} parent=11 // pred_fallthru
          _
        // Predicated region
        $region17: #{tpu_custom_call.1} parent=11 // pred_check
          %p224 = pneg %p84
        $region18: #{tpu_custom_call.1} parent=11 // pred_check_branch
          %226 = sbr.rel (%p224) target = $region20
        $region19: #{tpu_custom_call.1} parent=11 // pred_region
          %s228 = ssub.s32 128, 128
          %229 = vsyncadd [#allocation6], %s228
          %s230 = smul.addr %s29, 128
          %s231 = scalar_lea.hbm %s1, %s230
          %s233 = sshll.u32 [#allocation5], 4
          %s234 = int_to_ptr.vmem [resolvable:$true] %s233
          %236 = dma.hbm_to_vmem [thread:$0]  %s231, 128, %s234, [#allocation6]
        $region20: #{tpu_custom_call.1} parent=11 // pred_fallthru
          _
      $region12: #{tpu_custom_call.1} parent=5 // pred_fallthru
        _
      %p237 = scmp.lt.s32.totalorder %s20, 2
      // Predicated region
      $region21: #{tpu_custom_call.1} parent=5 // pred_check
        %p238 = pneg %p237
      $region22: #{tpu_custom_call.1} parent=5 // pred_check_branch
        %240 = sbr.rel (%p238) target = $region24
      $region23: #{tpu_custom_call.1} parent=5 // pred_region
        // Predicated region
        $region25: #{tpu_custom_call.1} parent=23 // pred_check
          %p241 = pneg %p106
        $region26: #{tpu_custom_call.1} parent=23 // pred_check_branch
          %243 = sbr.rel (%p241) target = $region28
        $region27: #{tpu_custom_call.1} parent=23 // pred_region
          %s244 = sand.u32 %s20, 1
          %s245 = scalar_lea.sflag [#allocation3], %s244
          %s246 = sand.u32 %s96, 1
          %s247 = smul.addr %s246, 8
          %s248 = scalar_lea.vmem [#allocation7], %s247
          %s250 = ssub.s32 128, 128
          %251 = vsyncadd %s245, %s250
          %s252 = sadd.s32 %s27, %s28
          %s253 = smul.addr %s252, 128
          %s254 = scalar_lea.hbm %s2, %s253
          %s256 = sshll.u32 %s248, 4
          %s257 = int_to_ptr.vmem [resolvable:$true] %s256
          %259 = dma.hbm_to_vmem [thread:$0]  %s254, 128, %s257, %s245
        $region28: #{tpu_custom_call.1} parent=23 // pred_fallthru
          _
        // Predicated region
        $region29: #{tpu_custom_call.1} parent=23 // pred_check
          %p260 = pneg %p134
        $region30: #{tpu_custom_call.1} parent=23 // pred_check_branch
          %262 = sbr.rel (%p260) target = $region32
        $region31: #{tpu_custom_call.1} parent=23 // pred_region
          %s263 = sand.u32 %s20, 1
          %s264 = scalar_lea.sflag [#allocation3], %s263
          %s265 = sand.u32 %s124, 1
          %s266 = smul.addr %s265, 8
          %s267 = scalar_lea.vmem [#allocation8], %s266
          %s269 = ssub.s32 128, 128
          %270 = vsyncadd %s264, %s269
          %s271 = sadd.s32 %s27, %s28
          %s272 = smul.addr %s271, 128
          %s273 = scalar_lea.hbm %s3, %s272
          %s275 = sshll.u32 %s267, 4
          %s276 = int_to_ptr.vmem [resolvable:$true] %s275
          %278 = dma.hbm_to_vmem [thread:$0]  %s273, 128, %s276, %s264
        $region32: #{tpu_custom_call.1} parent=23 // pred_fallthru
          _
      $region24: #{tpu_custom_call.1} parent=5 // pred_fallthru
        _
      %p279 = scmp.le.s32.totalorder 1, %s20
      %p280 = scmp.lt.s32.totalorder %s20, 3
      %p281 = pnand %p279, %p280
      %p282 = pneg %p281
      // Predicated region
      $region33: #{tpu_custom_call.1} parent=5 // pred_check
        _
      $region34: #{tpu_custom_call.1} parent=5 // pred_check_branch
        %284 = sbr.rel (%p281) target = $region36
      $region35: #{tpu_custom_call.1} parent=5 // pred_region
        %s285 = ssub.s32 %s20, 1
        // Predicated region
        $region37: #{tpu_custom_call.1} parent=35 // pred_check
          %p286 = pneg %p58
        $region38: #{tpu_custom_call.1} parent=35 // pred_check_branch
          %288 = sbr.rel (%p286) target = $region40
        $region39: #{tpu_custom_call.1} parent=35 // pred_region
          %289 = dma.done [#allocation3], 128
        $region40: #{tpu_custom_call.1} parent=35 // pred_fallthru
          _
        // Predicated region
        $region41: #{tpu_custom_call.1} parent=35 // pred_check
          %p290 = pneg %p84
        $region42: #{tpu_custom_call.1} parent=35 // pred_check_branch
          %292 = sbr.rel (%p290) target = $region44
        $region43: #{tpu_custom_call.1} parent=35 // pred_region
          %293 = dma.done [#allocation6], 128
        $region44: #{tpu_custom_call.1} parent=35 // pred_fallthru
          _
        %s294 = sand.u32 %s25, 1
        %s295 = scalar_lea.sflag [#allocation3], %s294
        %s296 = sand.u32 %s99, 1
        %s297 = smul.addr %s296, 8
        %s298 = scalar_lea.vmem [#allocation7], %s297
        // Predicated region
        $region45: #{tpu_custom_call.1} parent=35 // pred_check
          %p299 = pneg %p112
        $region46: #{tpu_custom_call.1} parent=35 // pred_check_branch
          %301 = sbr.rel (%p299) target = $region48
        $region47: #{tpu_custom_call.1} parent=35 // pred_region
          %302 = dma.done %s295, 128
        $region48: #{tpu_custom_call.1} parent=35 // pred_fallthru
          _
        %s303 = sand.u32 %s25, 1
        %s304 = scalar_lea.sflag [#allocation3], %s303
        %s305 = sand.u32 %s127, 1
        %s306 = smul.addr %s305, 8
        %s307 = scalar_lea.vmem [#allocation8], %s306
        // Predicated region
        $region49: #{tpu_custom_call.1} parent=35 // pred_check
          %p308 = pneg %p140
        $region50: #{tpu_custom_call.1} parent=35 // pred_check_branch
          %310 = sbr.rel (%p308) target = $region52
        $region51: #{tpu_custom_call.1} parent=35 // pred_region
          %311 = dma.done %s304, 128
        $region52: #{tpu_custom_call.1} parent=35 // pred_fallthru
          _
        %p312 = pneg %p58
        %p313 = pneg %p55
        %p314 = pneg %p84
        %p315 = pneg %p81
        %s316 = sand.u32 %s25, 1
        %s317 = scalar_lea.sflag [#allocation3], %s316
        %s318 = sand.u32 %s99, 1
        %s319 = smul.addr %s318, 8
        %s320 = scalar_lea.vmem [#allocation7], %s319
        %p321 = pneg %p112
        %p322 = pneg %p109
        %s323 = sand.u32 %s25, 1
        %s324 = scalar_lea.sflag [#allocation3], %s323
        %s325 = sand.u32 %s127, 1
        %s326 = smul.addr %s325, 8
        %s327 = scalar_lea.vmem [#allocation8], %s326
        %p328 = pneg %p140
        %p329 = pneg %p137
        %p330 = pneg %p168
        %p331 = pneg %p165
        %s332 = sand.u32 %s155, 1
        %s333 = scalar_lea.sflag [#allocation4], %s332
        %s334 = sand.u32 %s155, 1
        %s335 = smul.addr %s334, 8
        %s336 = scalar_lea.vmem [#allocation9], %s335
        %p337 = pneg %p196
        %p338 = pneg %p193
        %s339 = sand.u32 %s183, 1
        %s340 = scalar_lea.sflag [#allocation11], %s339
        %s341 = sand.u32 %s183, 1
        %s342 = smul.addr %s341, 8
        %s343 = scalar_lea.vmem [#allocation10], %s342
        %v344 = vld [vmem:[#allocation2] sm:$0xff]
        %v345 = vld [vmem:[#allocation5] sm:$0xff]
        %v346 = vld [vmem:[%s298] sm:$0xff]
        %v347 = vmul.f32 %v346, %v344
        %349 = vrot.lane.b32.xlu0 %v346, 112
        %v350 = vpop.permute.xlu0 %349
        %352 = vrot.lane.b32.xlu0 %v346, 16
        %v353 = vpop.permute.xlu0 %352
        %vm355 = vcmask 130048
        %v356 = vsel %vm355, %v350, %v353
        %v357 = vmul.f32 %v356, %v345
        %v358 = vadd.f32 %v347, %v357
        %360 = vrot.lane.b32.xlu0 %v344, 32
        %v361 = vpop.permute.xlu0 %360
        %v363 = vmul.f32 %v346, %v361
        %364 = vrot.lane.b32.xlu0 %v346, 80
        %v365 = vpop.permute.xlu0 %364
        %v367 = vsel %vm355, %v365, %v350
        %v368 = vmul.f32 %v367, %v345
        %370 = vrot.lane.b32.xlu0 %v368, 32
        %v371 = vpop.permute.xlu0 %370
        %v373 = vadd.f32 %v363, %v371
        %374 = vrot.lane.b32.xlu0 %v344, 64
        %v375 = vpop.permute.xlu0 %374
        %v377 = vmul.f32 %v346, %v375
        %378 = vrot.lane.b32.xlu0 %v346, 48
        %v379 = vpop.permute.xlu0 %378
        %v381 = vsel %vm355, %v379, %v365
        %v382 = vmul.f32 %v381, %v345
        %384 = vrot.lane.b32.xlu0 %v382, 64
        %v385 = vpop.permute.xlu0 %384
        %v387 = vadd.f32 %v377, %v385
        %388 = vrot.lane.b32.xlu0 %v344, 96
        %v389 = vpop.permute.xlu0 %388
        %v391 = vmul.f32 %v346, %v389
        %v392 = vsel %vm355, %v353, %v379
        %v393 = vmul.f32 %v392, %v345
        %395 = vrot.lane.b32.xlu0 %v393, 96
        %v396 = vpop.permute.xlu0 %395
        %v398 = vadd.f32 %v391, %v396
        %vm399 = vcmask 261120
        %v400 = vsel %vm399, %v358, %v373
        %vm401 = vcmask 523264
        %v402 = vsel %vm401, %v400, %v387
        %vm403 = vcmask 785408
        %v404 = vsel %vm403, %v402, %v398
        %405 = vst [vmem:[%s336] sm:$0xff] %v404
        %v406 = vld [vmem:[%s307] sm:$0xff]
        %v407 = vmul.f32 %v406, %v344
        %409 = vrot.lane.b32.xlu0 %v406, 112
        %v410 = vpop.permute.xlu0 %409
        %412 = vrot.lane.b32.xlu0 %v406, 16
        %v413 = vpop.permute.xlu0 %412
        %v415 = vsel %vm355, %v410, %v413
        %v416 = vmul.f32 %v415, %v345
        %v417 = vadd.f32 %v407, %v416
        %v418 = vmul.f32 %v406, %v361
        %419 = vrot.lane.b32.xlu0 %v406, 80
        %v420 = vpop.permute.xlu0 %419
        %v422 = vsel %vm355, %v420, %v410
        %v423 = vmul.f32 %v422, %v345
        %425 = vrot.lane.b32.xlu0 %v423, 32
        %v426 = vpop.permute.xlu0 %425
        %v428 = vadd.f32 %v418, %v426
        %v429 = vmul.f32 %v406, %v375
        %430 = vrot.lane.b32.xlu0 %v406, 48
        %v431 = vpop.permute.xlu0 %430
        %v433 = vsel %vm355, %v431, %v420
        %v434 = vmul.f32 %v433, %v345
        %436 = vrot.lane.b32.xlu0 %v434, 64
        %v437 = vpop.permute.xlu0 %436
        %v439 = vadd.f32 %v429, %v437
        %v440 = vmul.f32 %v406, %v389
        %v441 = vsel %vm355, %v413, %v431
        %v442 = vmul.f32 %v441, %v345
        %444 = vrot.lane.b32.xlu0 %v442, 96
        %v445 = vpop.permute.xlu0 %444
        %v447 = vadd.f32 %v440, %v445
        %v448 = vsel %vm399, %v417, %v428
        %v449 = vsel %vm401, %v448, %v439
        %v450 = vsel %vm403, %v449, %v447
        %451 = vst [vmem:[%s343] sm:$0xff] %v450
        %s452 = sand.u32 %s155, 1
        %s453 = scalar_lea.sflag [#allocation4], %s452
        %s454 = sand.u32 %s155, 1
        %s455 = smul.addr %s454, 8
        %s456 = scalar_lea.vmem [#allocation9], %s455
        %s457 = sand.u32 %s183, 1
        %s458 = scalar_lea.sflag [#allocation11], %s457
        %s459 = sand.u32 %s183, 1
        %s460 = smul.addr %s459, 8
        %s461 = scalar_lea.vmem [#allocation10], %s460
        // Predicated region
        $region53: #{tpu_custom_call.1} parent=35 // pred_check
          %p462 = pneg %p165
        $region54: #{tpu_custom_call.1} parent=35 // pred_check_branch
          %464 = sbr.rel (%p462) target = $region56
        $region55: #{tpu_custom_call.1} parent=35 // pred_region
          %s466 = ssub.s32 128, 128
          %467 = vsyncadd %s453, %s466
          %s468 = sadd.s32 %s29, %s30
          %s469 = smul.addr %s468, 128
          %s470 = scalar_lea.hbm %s4, %s469
          %s472 = sshll.u32 %s456, 4
          %s473 = int_to_ptr.vmem [resolvable:$true] %s472
          %475 = dma.vmem_to_hbm [thread:$0]  %s473, 128, %s470, %s453
        $region56: #{tpu_custom_call.1} parent=35 // pred_fallthru
          _
        // Predicated region
        $region57: #{tpu_custom_call.1} parent=35 // pred_check
          %p476 = pneg %p193
        $region58: #{tpu_custom_call.1} parent=35 // pred_check_branch
          %478 = sbr.rel (%p476) target = $region60
        $region59: #{tpu_custom_call.1} parent=35 // pred_region
          %s480 = ssub.s32 128, 128
          %481 = vsyncadd %s458, %s480
          %s482 = sadd.s32 %s29, %s30
          %s483 = smul.addr %s482, 128
          %s484 = scalar_lea.hbm %s5, %s483
          %s486 = sshll.u32 %s461, 4
          %s487 = int_to_ptr.vmem [resolvable:$true] %s486
          %489 = dma.vmem_to_hbm [thread:$0]  %s487, 128, %s484, %s458
        $region60: #{tpu_custom_call.1} parent=35 // pred_fallthru
          _
      $region36: #{tpu_custom_call.1} parent=5 // pred_fallthru
        _
      %p490 = scmp.le.s32.totalorder 2, %s20
      // Predicated region
      $region61: #{tpu_custom_call.1} parent=5 // pred_check
        %p491 = pneg %p490
      $region62: #{tpu_custom_call.1} parent=5 // pred_check_branch
        %493 = sbr.rel (%p491) target = $region64
      $region63: #{tpu_custom_call.1} parent=5 // pred_region
        %s494 = ssub.s32 %s20, 2
        // Predicated region
        $region65: #{tpu_custom_call.1} parent=63 // pred_check
          %p495 = pneg %p171
        $region66: #{tpu_custom_call.1} parent=63 // pred_check_branch
          %497 = sbr.rel (%p495) target = $region68
        $region67: #{tpu_custom_call.1} parent=63 // pred_region
          %s498 = sand.u32 %s156, 1
          %s499 = scalar_lea.sflag [#allocation4], %s498
          %s500 = sand.u32 %s156, 1
          %s501 = smul.addr %s500, 8
          %s502 = scalar_lea.vmem [#allocation9], %s501
          %503 = dma.done %s499, 128
        $region68: #{tpu_custom_call.1} parent=63 // pred_fallthru
          _
        // Predicated region
        $region69: #{tpu_custom_call.1} parent=63 // pred_check
          %p504 = pneg %p199
        $region70: #{tpu_custom_call.1} parent=63 // pred_check_branch
          %506 = sbr.rel (%p504) target = $region72
        $region71: #{tpu_custom_call.1} parent=63 // pred_region
          %s507 = sand.u32 %s184, 1
          %s508 = scalar_lea.sflag [#allocation11], %s507
          %s509 = sand.u32 %s184, 1
          %s510 = smul.addr %s509, 8
          %s511 = scalar_lea.vmem [#allocation10], %s510
          %512 = dma.done %s508, 128
        $region72: #{tpu_custom_call.1} parent=63 // pred_fallthru
          _
      $region64: #{tpu_custom_call.1} parent=5 // pred_fallthru
        _
    $region6: #{tpu_custom_call.1} parent=1 // loop_footer
      %s24 = sadd.s32 1, %s20
    $region7: #{tpu_custom_call.1} parent=1 // loop_footer_branch
      %19 = sbr.rel target = $region3
    $region8: #{tpu_custom_call.1} parent=1 // loop_exit
      _
    %513 = vsyncpa [#allocation3], 1
    %s514 = scalar_lea.sflag [#allocation3], 1
    %515 = vsyncpa %s514, 1
    %516 = vsyncpa [#allocation6], 1
    %517 = vsyncpa [#allocation4], 1
    %s518 = scalar_lea.sflag [#allocation4], 1
    %519 = vsyncpa %s518, 1
    %520 = vsyncpa [#allocation11], 1
    %s521 = scalar_lea.sflag [#allocation11], 1
    %522 = vsyncpa %s521, 1

</llo_original>
